<compile_context>
chip_gen: v5e
topology: v5e:2x2
jax: 0.10.0
libtpu: 0.0.40
codegen_flags: <defaults>
</compile_context>

<pallas_src>
import functools
import math

import jax
import jax.numpy as jnp
from jax import lax
from jax.experimental import pallas as pl
from jax.experimental.pallas import tpu as pltpu


# ----------------------------------------------------------------------------
# helpers
# ----------------------------------------------------------------------------
def _round_up(x, m):
    return ((x + m - 1) // m) * m


def _pick_tm(m, target=1024, granule=256):
    # Full-extent block for small M (always legal); otherwise a balanced tile
    # that is a multiple of the MXU row granule so the tail tile is not nearly
    # empty.
    if m <= target:
        return m
    n_tiles = pl.cdiv(m, target)
    return _round_up(pl.cdiv(m, n_tiles), granule)


def _vmem_limit(*tile_bytes):
    # need + headroom, capped well below physical VMEM (v7x has only 64 MiB,
    # leave room for compiler-internal scratch).  No artificial floor.
    need = int(sum(tile_bytes))
    return int(min(need + (12 << 20), 48 << 20))


# ----------------------------------------------------------------------------
# kernel 1: linear1, output stored as (d_lat, coarse_token, (d_lon, c))
# ----------------------------------------------------------------------------
def _linear1_kernel(x_ref, w_ref, h_ref):
    # x_ref: (tm, C) input dtype; w_ref: (2, C, 2*D) bf16; h_ref: (2, tm, 2*D) bf16
    x = x_ref[...].astype(jnp.bfloat16)
    h_ref[0] = jnp.dot(x, w_ref[0], preferred_element_type=jnp.float32).astype(h_ref.dtype)
    h_ref[1] = jnp.dot(x, w_ref[1], preferred_element_type=jnp.float32).astype(h_ref.dtype)


# ----------------------------------------------------------------------------
# kernel 2: fused pixel-shuffle gather + crop + LayerNorm + linear2
# (one fine-latitude row of the output per grid step)
# ----------------------------------------------------------------------------
def _ln_linear2_kernel(h_ref, w_ref, b_ref, o_ref, *, out_dim, pad_left, eps):
    # h_ref: (1, B, out_pl, 1, in_lon, 2*D) bf16  -- one d_lat slab, one coarse lat row
    # w_ref: (D, D) bf16 (gamma folded in); b_ref: (1, D) f32 (= beta @ W2)
    # o_ref: (B, out_pl, 1, out_lon_even//2, 2*D) -- one fine lat row, lon packed in pairs
    _, Bn, Pn, _, _, _ = h_ref.shape
    half = o_ref.shape[3]
    D = out_dim
    w = w_ref[...]
    bias = b_ref[...]
    for b in range(Bn):
        for p in range(Pn):
            row = h_ref[0, b, p, 0]                       # (in_lon, 2*D)
            for q in (0, 1):                              # output longitude parity
                src = (q + pad_left) % 2                  # source d_lon chunk
                r0 = (q + pad_left) // 2                  # first coarse lon
                xq = row[r0:r0 + half, src * D:(src + 1) * D].astype(jnp.float32)
                mean = jnp.mean(xq, axis=-1, keepdims=True)
                xc = xq - mean
                var = jnp.mean(xc * xc, axis=-1, keepdims=True)
                xn = (xc * lax.rsqrt(var + eps)).astype(w.dtype)   # bf16 for MXU
                y = jnp.dot(xn, w, preferred_element_type=jnp.float32) + bias
                o_ref[b, p, 0, :, q * D:(q + 1) * D] = y.astype(o_ref.dtype)


# ----------------------------------------------------------------------------
# UpSample3D forward
# ----------------------------------------------------------------------------
def upsample_3d(x, w1, w2, gamma, beta, input_resolution, output_resolution,
                eps=1e-5, tm=1024):
    """
    Args:
      x:     (B, N, C)  with N = in_pl*in_lat*in_lon
      w1:    (C, 4*out_dim)     -- linear1 weight, (in, out) layout (= PyTorch W.T)
      w2:    (out_dim, out_dim) -- linear2 weight, (in, out) layout (= PyTorch W.T)
      gamma, beta: (out_dim,)   -- LayerNorm affine params
    Returns:
      (B, out_pl*out_lat*out_lon, out_dim)
    """
    B, N, C = x.shape
    in_pl, in_lat, in_lon = input_resolution
    out_pl, out_lat, out_lon = output_resolution
    D = C // 2                                  # out_dim (implied by the module reshape)
    assert N == in_pl * in_lat * in_lon
    assert w1.shape == (C, 4 * D) and w2.shape == (D, D)
    assert out_pl <= in_pl and out_lat <= 2 * in_lat and out_lon <= 2 * in_lon

    pad_top = (2 * in_lat - out_lat) // 2
    pad_left = (2 * in_lon - out_lon) // 2

    # Weight prep (tiny, one-off): bf16 MXU operands; fold LayerNorm gamma into
    # w2 and beta into an additive bias row.
    w1s = jnp.transpose(w1.reshape(C, 2, 2 * D), (1, 0, 2)).astype(jnp.bfloat16)
    w2g = (gamma.astype(jnp.float32)[:, None] * w2.astype(jnp.float32)).astype(jnp.bfloat16)
    bias = (beta.astype(jnp.float32) @ w2.astype(jnp.float32)).reshape(1, D)

    # ---- kernel 1: linear1 ---------------------------------------------------
    M1 = B * N
    tm1 = _pick_tm(M1, tm)
    x2d = x.reshape(M1, C)
    h = pl.pallas_call(
        _linear1_kernel,
        out_shape=jax.ShapeDtypeStruct((2, M1, 2 * D), jnp.bfloat16),
        grid_spec=pltpu.PrefetchScalarGridSpec(
            num_scalar_prefetch=0,
            grid=(pl.cdiv(M1, tm1),),
            in_specs=[
                pl.BlockSpec((tm1, C), lambda i: (i, 0)),          # tokens tiled over M
                pl.BlockSpec((2, C, 2 * D), lambda i: (0, 0, 0)),  # weight resident
            ],
            out_specs=pl.BlockSpec((2, tm1, 2 * D), lambda i: (0, i, 0)),
        ),
        compiler_params=pltpu.CompilerParams(
            dimension_semantics=("parallel",),
            vmem_limit_bytes=_vmem_limit(
                2 * tm1 * C * x.dtype.itemsize,      # x tiles   (double-buffered)
                2 * 2 * tm1 * 2 * D * 2,             # h tiles   (double-buffered, bf16)
                2 * 2 * C * 2 * D * 2),              # resident w1 (bf16)
        ),
        cost_estimate=pl.CostEstimate(
            flops=2 * M1 * C * 4 * D,
            transcendentals=0,
            bytes_accessed=M1 * C * x.dtype.itemsize + 4 * C * D * 2 + M1 * 4 * D * 2),
    )(x2d, w1s)

    # free metadata re-view: (d_lat, B, pl, lat, lon, 2*out_dim)
    h6 = h.reshape(2, B, in_pl, in_lat, in_lon, 2 * D)

    # ---- kernel 2: shuffle/crop gather + LayerNorm + linear2 ------------------
    # Pad an odd out_lon up to even so fine-lon tokens pack in lane-pairs; the
    # extra column reads valid (cropped-away) data and is trimmed afterwards.
    out_lon_even = out_lon + (out_lon & 1)
    half = out_lon_even // 2
    kern2 = functools.partial(_ln_linear2_kernel, out_dim=D, pad_left=pad_left, eps=eps)

    def h_map(i):
        f = i + pad_top                       # un-cropped fine latitude index
        return (f % 2, 0, 0, f // 2, 0, 0)    # (d_lat, b, pl, coarse_lat, lon, chunk)

    out5 = pl.pallas_call(
        kern2,
        out_shape=jax.ShapeDtypeStruct((B, out_pl, out_lat, half, 2 * D), x.dtype),
        grid_spec=pltpu.PrefetchScalarGridSpec(
            num_scalar_prefetch=0,
            grid=(out_lat,),
            in_specs=[
                pl.BlockSpec((1, B, out_pl, 1, in_lon, 2 * D), h_map),
                pl.BlockSpec((D, D), lambda i: (0, 0)),   # w2 (gamma folded), resident
                pl.BlockSpec((1, D), lambda i: (0, 0)),   # bias row, resident
            ],
            out_specs=pl.BlockSpec((B, out_pl, 1, half, 2 * D),
                                   lambda i: (0, 0, i, 0, 0)),
        ),
        compiler_params=pltpu.CompilerParams(
            dimension_semantics=("parallel",),
            vmem_limit_bytes=_vmem_limit(
                2 * B * out_pl * in_lon * 2 * D * 2,                 # h blocks (bf16)
                2 * B * out_pl * half * 2 * D * x.dtype.itemsize,    # out blocks
                D * D * 2 + 4 * D),                                  # resident w2/bias
        ),
        cost_estimate=pl.CostEstimate(
            flops=2 * B * out_pl * out_lat * out_lon_even * D * D
                  + 8 * B * out_pl * out_lat * out_lon_even * D,
            transcendentals=B * out_pl * out_lat * out_lon_even,
            bytes_accessed=out_lat * B * out_pl * in_lon * 2 * D * 2
                           + B * out_pl * out_lat * half * 2 * D * x.dtype.itemsize),
    )(h6, w2g, bias)

    # TODO(synk): for very small B*out_pl*in_lon, block several fine-lat rows per
    # grid step to amortize the ~0.35us/step pipeline overhead further.
    out = out5.reshape(B, out_pl, out_lat, out_lon_even, D)
    if out_lon_even != out_lon:
        out = out[:, :, :, :out_lon, :]
    return out.reshape(B, out_pl * out_lat * out_lon, D)


# ----------------------------------------------------------------------------
# Pure-JAX reference (mirrors the PyTorch forward, f32 throughout)
# ----------------------------------------------------------------------------
def _reference(x, w1, w2, gamma, beta, input_resolution, output_resolution, eps=1e-5):
    B, N, C = x.shape
    in_pl, in_lat, in_lon = input_resolution
    out_pl, out_lat, out_lon = output_resolution
    out_dim = C // 2
    h = x @ w1
    h = h.reshape(B, in_pl, in_lat, in_lon, 2, 2, out_dim)
    h = jnp.transpose(h, (0, 1, 2, 4, 3, 5, 6))
    h = h.reshape(B, in_pl, 2 * in_lat, 2 * in_lon, out_dim)
    pad_h = 2 * in_lat - out_lat
    pad_w = 2 * in_lon - out_lon
    pad_top = pad_h // 2
    pad_bottom = pad_h - pad_top
    pad_left = pad_w // 2
    pad_right = pad_w - pad_left
    h = h[:, :out_pl,
          pad_top:2 * in_lat - pad_bottom,
          pad_left:2 * in_lon - pad_right, :]
    h = h.reshape(B, out_pl * out_lat * out_lon, out_dim)
    mean = h.mean(-1, keepdims=True)
    var = ((h - mean) ** 2).mean(-1, keepdims=True)
    hn = (h - mean) / jnp.sqrt(var + eps) * gamma + beta
    return hn @ w2


# ----------------------------------------------------------------------------
if __name__ == "__main__":
    # Small deterministic config; exercises the pressure-level crop (3->2) and
    # the latitude crop (8->7).  out_dim = in_dim // 2 as required by the module.
    in_dim = 64
    out_dim = 32
    input_resolution = (3, 4, 4)      # (pl, lat, lon) on the coarse grid
    output_resolution = (2, 7, 8)     # target (pl, lat, lon) after 2x up + crop
    B = 2
    N = input_resolution[0] * input_resolution[1] * input_resolution[2]

    key = jax.random.PRNGKey(0)
    kx, k1, k2, kg, kb = jax.random.split(key, 5)

    x = jax.random.normal(kx, (B, N, in_dim), dtype=jnp.float32)
    bound1 = 1.0 / math.sqrt(in_dim)
    w1 = jax.random.uniform(k1, (in_dim, 4 * out_dim),
                            minval=-bound1, maxval=bound1, dtype=jnp.float32)
    bound2 = 1.0 / math.sqrt(out_dim)
    w2 = jax.random.uniform(k2, (out_dim, out_dim),
                            minval=-bound2, maxval=bound2, dtype=jnp.float32)
    gamma = 1.0 + 0.1 * jax.random.normal(kg, (out_dim,), dtype=jnp.float32)
    beta = 0.1 * jax.random.normal(kb, (out_dim,), dtype=jnp.float32)

    out = upsample_3d(x, w1, w2, gamma, beta, input_resolution, output_resolution)
    out = jax.block_until_ready(out)

    ref = _reference(x, w1, w2, gamma, beta, input_resolution, output_resolution)

    expect_shape = (B,
                    output_resolution[0] * output_resolution[1] * output_resolution[2],
                    out_dim)
    assert out.shape == expect_shape, out.shape
    # Tolerance sized for bf16 MXU operands / bf16 intermediate vs the f32 reference.
    assert jnp.allclose(out, ref, atol=3e-2, rtol=3e-2), (
        float(jnp.max(jnp.abs(out - ref))))

    print("KERNEL_OK")
</pallas_src>

<mosaic_0001>
module attributes {stable_mosaic.version = 11 : i64} {
  func.func @_linear1_kernel(%arg0: i32, %arg1: memref<96x64xf32, #tpu.memory_space<vmem>>, %arg2: memref<2x64x64xbf16, #tpu.memory_space<vmem>>, %arg3: memref<2x96x64xbf16, #tpu.memory_space<vmem>>) attributes {dimension_semantics = [#tpu.dimension_semantics<parallel>], iteration_bounds = array<i64: 1>, scalar_prefetch = 0 : i64, scratch_operands = 0 : i64, tpu.core_type = #tpu.core_type<tc>, window_params = [{transform_indices = @transform_0, window_bounds = array<i64: 96, 64>}, {pipeline_mode = #tpu.pipeline_mode<synchronous>, transform_indices = @transform_1, window_bounds = array<i64: 2, 64, 64>}, {transform_indices = @transform_2, window_bounds = array<i64: 2, 96, 64>}]} {
    %c0 = arith.constant 0 : index
    %c0_0 = arith.constant 0 : index
    %0 = vector.load %arg1[%c0, %c0_0] : memref<96x64xf32, #tpu.memory_space<vmem>>, vector<96x64xf32>
    %1 = arith.truncf %0 : vector<96x64xf32> to vector<96x64xbf16>
    %c0_1 = arith.constant 0 : index
    %c0_2 = arith.constant 0 : index
    %c0_3 = arith.constant 0 : index
    %2 = vector.load %arg2[%c0_1, %c0_2, %c0_3] : memref<2x64x64xbf16, #tpu.memory_space<vmem>>, vector<1x64x64xbf16>
    %3 = vector.shape_cast %2 : vector<1x64x64xbf16> to vector<64x64xbf16>
    %cst = arith.constant dense<0.000000e+00> : vector<96x64xf32>
    %4 = tpu.matmul %1, %3, %cst {dimension_numbers = #tpu.dot_dimension_numbers<[1], [0], [0], [1], [0, 0, 1, 1], [], []>} : vector<96x64xbf16>, vector<64x64xbf16>, vector<96x64xf32> -> vector<96x64xf32>
    %5 = arith.truncf %4 : vector<96x64xf32> to vector<96x64xbf16>
    %c0_4 = arith.constant 0 : index
    %c0_5 = arith.constant 0 : index
    %c0_6 = arith.constant 0 : index
    %6 = vector.load %arg3[%c0_4, %c0_5, %c0_6] : memref<2x96x64xbf16, #tpu.memory_space<vmem>>, vector<1x96x64xbf16>
    %7 = vector.shape_cast %6 : vector<1x96x64xbf16> to vector<96x64xbf16>
    %8 = vector.shape_cast %5 : vector<96x64xbf16> to vector<1x96x64xbf16>
    tpu.vector_store %arg3[%c0_4, %c0_5, %c0_6], %8 {strides = array<i32>} : memref<2x96x64xbf16, #tpu.memory_space<vmem>>, vector<1x96x64xbf16>,
    %c1 = arith.constant 1 : index
    %c0_7 = arith.constant 0 : index
    %c0_8 = arith.constant 0 : index
    %9 = vector.load %arg2[%c1, %c0_7, %c0_8] : memref<2x64x64xbf16, #tpu.memory_space<vmem>>, vector<1x64x64xbf16>
    %10 = vector.shape_cast %9 : vector<1x64x64xbf16> to vector<64x64xbf16>
    %cst_9 = arith.constant dense<0.000000e+00> : vector<96x64xf32>
    %11 = tpu.matmul %1, %10, %cst_9 {dimension_numbers = #tpu.dot_dimension_numbers<[1], [0], [0], [1], [0, 0, 1, 1], [], []>} : vector<96x64xbf16>, vector<64x64xbf16>, vector<96x64xf32> -> vector<96x64xf32>
    %12 = arith.truncf %11 : vector<96x64xf32> to vector<96x64xbf16>
    %c1_10 = arith.constant 1 : index
    %c0_11 = arith.constant 0 : index
    %c0_12 = arith.constant 0 : index
    %13 = vector.load %arg3[%c1_10, %c0_11, %c0_12] : memref<2x96x64xbf16, #tpu.memory_space<vmem>>, vector<1x96x64xbf16>
    %14 = vector.shape_cast %13 : vector<1x96x64xbf16> to vector<96x64xbf16>
    %15 = vector.shape_cast %12 : vector<96x64xbf16> to vector<1x96x64xbf16>
    tpu.vector_store %arg3[%c1_10, %c0_11, %c0_12], %15 {strides = array<i32>} : memref<2x96x64xbf16, #tpu.memory_space<vmem>>, vector<1x96x64xbf16>,
    return
  }
  func.func @transform_0(%arg0: i32) -> (i32, i32) {
    %c0_i32 = arith.constant 0 : i32
    %c0_i32_0 = arith.constant 0 : i32
    return %arg0, %c0_i32 : i32, i32
  }
  func.func @transform_1(%arg0: i32) -> (i32, i32, i32) {
    %c0_i32 = arith.constant 0 : i32
    %c0_i32_0 = arith.constant 0 : i32
    %c0_i32_1 = arith.constant 0 : i32
    %c0_i32_2 = arith.constant 0 : i32
    return %c0_i32, %c0_i32_0, %c0_i32_1 : i32, i32, i32
  }
  func.func @transform_2(%arg0: i32) -> (i32, i32, i32) {
    %c0_i32 = arith.constant 0 : i32
    %c0_i32_0 = arith.constant 0 : i32
    %c0_i32_1 = arith.constant 0 : i32
    return %c0_i32, %arg0, %c0_i32_0 : i32, i32, i32
  }
}

</mosaic_0001>

<llo_original>
// kernel: tpu_custom_call.1
$region0: #{tpu_custom_call.1}
  #allocation0 [shape = 'u32[]', space=smem, size = 0x4, offset = 0x4, fixed_abs, tag = 'smem constant byte address 0x4 - core index']
  #allocation1 [shape = 'u32[72,128]{1,0:T(1,128)}', space=vmem, size = 0x9000, scoped, tag = 'internal scratch']
  %s0 = inlined_call_operand.vmem [shape: f32[96,64], index: 0, kind: input, shape index: {}]
  %s1 = inlined_call_operand.vmem [shape: bf16[2,64,64], index: 1, kind: input, shape index: {}]
  %s2 = inlined_call_operand.vmem [shape: bf16[2,96,64], index: 2, kind: output, shape index: {}]
  %s3 = sld [smem:[#allocation0]]
  $region18: #{tpu_custom_call.1} parent=0
    _
  %s5 = ssub.s32 1, %s3
  %s6 = scalar_select 0, %s5, %s3
  // Predicated region
  $region2: #{tpu_custom_call.1} parent=0 // pred_check
    _
  $region3: #{tpu_custom_call.1} parent=0 // pred_check_branch
    %8 = sbr.rel (0) target = $region5
  $region4: #{tpu_custom_call.1} parent=0 // pred_region
    _
  $region5: #{tpu_custom_call.1} parent=0 // pred_fallthru
    _
  // Predicated region
  $region6: #{tpu_custom_call.1} parent=0 // pred_check
    _
  $region7: #{tpu_custom_call.1} parent=0 // pred_check_branch
    %10 = sbr.rel (0) target = $region9
  $region8: #{tpu_custom_call.1} parent=0 // pred_region
    _
  $region9: #{tpu_custom_call.1} parent=0 // pred_fallthru
    _
  %v12 = vld [vmem:[%s0] sm:$0xff]
  %v13 = vld [vmem:[%s0 + $0x8] sm:$0xff]
  %v14 = vld [vmem:[%s0 + $0x10] sm:$0xff]
  %v15 = vld [vmem:[%s0 + $0x18] sm:$0xff]
  %v16 = vld [vmem:[%s0 + $0x20] sm:$0xff]
  %v17 = vld [vmem:[%s0 + $0x28] sm:$0xff]
  %v18 = vld [vmem:[%s0 + $0x30] sm:$0xff]
  %v19 = vld [vmem:[%s0 + $0x38] sm:$0xff]
  %v20 = vld [vmem:[%s0 + $0x40] sm:$0xff]
  %v21 = vld [vmem:[%s0 + $0x48] sm:$0xff]
  %v22 = vld [vmem:[%s0 + $0x50] sm:$0xff]
  %v23 = vld [vmem:[%s0 + $0x58] sm:$0xff]
  %v24 = vpack.c.bf16 %v13, %v12
  %v25 = vpack.c.bf16 %v15, %v14
  %v26 = vpack.c.bf16 %v17, %v16
  %v27 = vpack.c.bf16 %v19, %v18
  %v28 = vpack.c.bf16 %v21, %v20
  %v29 = vpack.c.bf16 %v23, %v22
  %v30 = vld [vmem:[%s1] sm:$0xf]
  %v31 = vld [vmem:[%s1 + $0x4] sm:$0xf]
  %v32 = vld [vmem:[%s1 + $0x8] sm:$0xf]
  %v33 = vld [vmem:[%s1 + $0xc] sm:$0xf]
  %v34 = vld [vmem:[%s1 + $0x10] sm:$0xf]
  %v35 = vld [vmem:[%s1 + $0x14] sm:$0xf]
  %v36 = vld [vmem:[%s1 + $0x18] sm:$0xf]
  %v37 = vld [vmem:[%s1 + $0x1c] sm:$0xf]
  %v46 = vunpack.c.l.b16 %v30
  %v47 = vunpack.c.l.b16 %v31
  %v48 = vunpack.c.l.b16 %v32
  %v49 = vunpack.c.l.b16 %v33
  %v50 = vunpack.c.l.b16 %v34
  %v51 = vunpack.c.l.b16 %v35
  %v52 = vunpack.c.l.b16 %v36
  %v53 = vunpack.c.l.b16 %v37
  %v54 = vpack.c.b16 %v47, %v46
  %v55 = vpack.c.b16 %v49, %v48
  %v56 = vpack.c.b16 %v51, %v50
  %v57 = vpack.c.b16 %v53, %v52
  %vm62 = vcmask 523264
  %v64 = vsel %vm62, %v24, 0
  %v67 = vsel %vm62, %v25, 0
  %v70 = vsel %vm62, %v26, 0
  %v73 = vsel %vm62, %v27, 0
  %v76 = vsel %vm62, %v28, 0
  %v79 = vsel %vm62, %v29, 0
  %81 = vmatpush.bf16.msra.mxu0 0
  %82 = vmatpush.bf16.msra.mxu0 0
  %83 = vmatpush.bf16.msra.mxu0 0
  %84 = vmatpush.bf16.msra.mxu0 0
  %85 = vmatpush.bf16.msra.mxu0 %v57
  %86 = vmatpush.bf16.msra.mxu0 %v56
  %87 = vmatpush.bf16.msra.mxu0 %v55
  %88 = vmatpush.bf16.msra.mxu0 %v54
  %89 = vmatmul.bf16.gmra.mxu0 %v64
  %v90 = vpop.f32.mrf.mxu0
  %v91 = vadd.f32 0.0, %v90
  %v92 = vpop.f32.mrf.mxu0
  %v93 = vadd.f32 0.0, %v92
  %94 = vmatmul.bf16.gmra.mxu0 %v67
  %v95 = vpop.f32.mrf.mxu0
  %v96 = vadd.f32 0.0, %v95
  %v97 = vpop.f32.mrf.mxu0
  %v98 = vadd.f32 0.0, %v97
  %99 = vmatmul.bf16.gmra.mxu0 %v70
  %v100 = vpop.f32.mrf.mxu0
  %v101 = vadd.f32 0.0, %v100
  %v102 = vpop.f32.mrf.mxu0
  %v103 = vadd.f32 0.0, %v102
  %104 = vmatmul.bf16.gmra.mxu0 %v73
  %v105 = vpop.f32.mrf.mxu0
  %v106 = vadd.f32 0.0, %v105
  %v107 = vpop.f32.mrf.mxu0
  %v108 = vadd.f32 0.0, %v107
  %109 = vmatmul.bf16.gmra.mxu0 %v76
  %v110 = vpop.f32.mrf.mxu0
  %v111 = vadd.f32 0.0, %v110
  %v112 = vpop.f32.mrf.mxu0
  %v113 = vadd.f32 0.0, %v112
  %114 = vmatmul.bf16.gmra.mxu0 %v79
  %v115 = vpop.f32.mrf.mxu0
  %v116 = vadd.f32 0.0, %v115
  %v117 = vpop.f32.mrf.mxu0
  %v118 = vadd.f32 0.0, %v117
  %119 = vdwg.mxu0
  %v120 = vpack.c.bf16 %v91, %v91
  %v121 = vpack.c.bf16 %v93, %v93
  %v122 = vpack.c.bf16 %v96, %v96
  %v123 = vpack.c.bf16 %v98, %v98
  %v124 = vpack.c.bf16 %v101, %v101
  %v125 = vpack.c.bf16 %v103, %v103
  %v126 = vpack.c.bf16 %v106, %v106
  %v127 = vpack.c.bf16 %v108, %v108
  %v128 = vpack.c.bf16 %v111, %v111
  %v129 = vpack.c.bf16 %v113, %v113
  %v130 = vpack.c.bf16 %v116, %v116
  %v131 = vpack.c.bf16 %v118, %v118
  %vm132 = vcmask 519168
  %133 = vst.msk [vmem:[%s2] sm:$0xf] %vm132, %v120
  %134 = vst.msk [vmem:[%s2 + $0x4] sm:$0xf] %vm132, %v121
  %135 = vst.msk [vmem:[%s2 + $0x8] sm:$0xf] %vm132, %v122
  %136 = vst.msk [vmem:[%s2 + $0xc] sm:$0xf] %vm132, %v123
  %137 = vst.msk [vmem:[%s2 + $0x10] sm:$0xf] %vm132, %v124
  %138 = vst.msk [vmem:[%s2 + $0x14] sm:$0xf] %vm132, %v125
  %139 = vst.msk [vmem:[%s2 + $0x18] sm:$0xf] %vm132, %v126
  %140 = vst.msk [vmem:[%s2 + $0x1c] sm:$0xf] %vm132, %v127
  %141 = vst.msk [vmem:[%s2 + $0x20] sm:$0xf] %vm132, %v128
  %142 = vst.msk [vmem:[%s2 + $0x24] sm:$0xf] %vm132, %v129
  %143 = vst.msk [vmem:[%s2 + $0x28] sm:$0xf] %vm132, %v130
  %144 = vst.msk [vmem:[%s2 + $0x2c] sm:$0xf] %vm132, %v131
  %s145 = scalar_lea.vmem %s1, 32
  %v146 = vld [vmem:[%s145] sm:$0xf]
  %v147 = vld [vmem:[%s145 + $0x4] sm:$0xf]
  %v148 = vld [vmem:[%s145 + $0x8] sm:$0xf]
  %v149 = vld [vmem:[%s145 + $0xc] sm:$0xf]
  %v150 = vld [vmem:[%s145 + $0x10] sm:$0xf]
  %v151 = vld [vmem:[%s145 + $0x14] sm:$0xf]
  %v152 = vld [vmem:[%s145 + $0x18] sm:$0xf]
  %v153 = vld [vmem:[%s145 + $0x1c] sm:$0xf]
  %v162 = vunpack.c.l.b16 %v146
  %v163 = vunpack.c.l.b16 %v147
  %v164 = vunpack.c.l.b16 %v148
  %v165 = vunpack.c.l.b16 %v149
  %v166 = vunpack.c.l.b16 %v150
  %v167 = vunpack.c.l.b16 %v151
  %v168 = vunpack.c.l.b16 %v152
  %v169 = vunpack.c.l.b16 %v153
  %v170 = vpack.c.b16 %v163, %v162
  %v171 = vpack.c.b16 %v165, %v164
  %v172 = vpack.c.b16 %v167, %v166
  %v173 = vpack.c.b16 %v169, %v168
  %178 = vmatpush.bf16.msra.mxu0 0
  %179 = vmatpush.bf16.msra.mxu0 0
  %180 = vmatpush.bf16.msra.mxu0 0
  %181 = vmatpush.bf16.msra.mxu0 0
  %182 = vmatpush.bf16.msra.mxu0 %v173
  %183 = vmatpush.bf16.msra.mxu0 %v172
  %184 = vmatpush.bf16.msra.mxu0 %v171
  %185 = vmatpush.bf16.msra.mxu0 %v170
  %186 = vmatmul.bf16.gmra.mxu0 %v64
  %v187 = vpop.f32.mrf.mxu0
  %v188 = vadd.f32 0.0, %v187
  %v189 = vpop.f32.mrf.mxu0
  %v190 = vadd.f32 0.0, %v189
  %191 = vmatmul.bf16.gmra.mxu0 %v67
  %v192 = vpop.f32.mrf.mxu0
  %v193 = vadd.f32 0.0, %v192
  %v194 = vpop.f32.mrf.mxu0
  %v195 = vadd.f32 0.0, %v194
  %196 = vmatmul.bf16.gmra.mxu0 %v70
  %v197 = vpop.f32.mrf.mxu0
  %v198 = vadd.f32 0.0, %v197
  %v199 = vpop.f32.mrf.mxu0
  %v200 = vadd.f32 0.0, %v199
  %201 = vmatmul.bf16.gmra.mxu0 %v73
  %v202 = vpop.f32.mrf.mxu0
  %v203 = vadd.f32 0.0, %v202
  %v204 = vpop.f32.mrf.mxu0
  %v205 = vadd.f32 0.0, %v204
  %206 = vmatmul.bf16.gmra.mxu0 %v76
  %v207 = vpop.f32.mrf.mxu0
  %v208 = vadd.f32 0.0, %v207
  %v209 = vpop.f32.mrf.mxu0
  %v210 = vadd.f32 0.0, %v209
  %211 = vmatmul.bf16.gmra.mxu0 %v79
  %v212 = vpop.f32.mrf.mxu0
  %v213 = vadd.f32 0.0, %v212
  %v214 = vpop.f32.mrf.mxu0
  %v215 = vadd.f32 0.0, %v214
  %216 = vdwg.mxu0
  %v217 = vpack.c.bf16 %v188, %v188
  %v218 = vpack.c.bf16 %v190, %v190
  %v219 = vpack.c.bf16 %v193, %v193
  %v220 = vpack.c.bf16 %v195, %v195
  %v221 = vpack.c.bf16 %v198, %v198
  %v222 = vpack.c.bf16 %v200, %v200
  %v223 = vpack.c.bf16 %v203, %v203
  %v224 = vpack.c.bf16 %v205, %v205
  %v225 = vpack.c.bf16 %v208, %v208
  %v226 = vpack.c.bf16 %v210, %v210
  %v227 = vpack.c.bf16 %v213, %v213
  %v228 = vpack.c.bf16 %v215, %v215
  %s229 = scalar_lea.vmem %s2, 48
  %230 = vst.msk [vmem:[%s229] sm:$0xf] %vm132, %v217
  %231 = vst.msk [vmem:[%s229 + $0x4] sm:$0xf] %vm132, %v218
  %232 = vst.msk [vmem:[%s229 + $0x8] sm:$0xf] %vm132, %v219
  %233 = vst.msk [vmem:[%s229 + $0xc] sm:$0xf] %vm132, %v220
  %234 = vst.msk [vmem:[%s229 + $0x10] sm:$0xf] %vm132, %v221
  %235 = vst.msk [vmem:[%s229 + $0x14] sm:$0xf] %vm132, %v222
  %236 = vst.msk [vmem:[%s229 + $0x18] sm:$0xf] %vm132, %v223
  %237 = vst.msk [vmem:[%s229 + $0x1c] sm:$0xf] %vm132, %v224
  %238 = vst.msk [vmem:[%s229 + $0x20] sm:$0xf] %vm132, %v225
  %239 = vst.msk [vmem:[%s229 + $0x24] sm:$0xf] %vm132, %v226
  %240 = vst.msk [vmem:[%s229 + $0x28] sm:$0xf] %vm132, %v227
  %241 = vst.msk [vmem:[%s229 + $0x2c] sm:$0xf] %vm132, %v228
  // Predicated region
  $region10: #{tpu_custom_call.1} parent=0 // pred_check
    _
  $region11: #{tpu_custom_call.1} parent=0 // pred_check_branch
    %243 = sbr.rel (0) target = $region13
  $region12: #{tpu_custom_call.1} parent=0 // pred_region
    _
  $region13: #{tpu_custom_call.1} parent=0 // pred_fallthru
    _
  // Predicated region
  $region14: #{tpu_custom_call.1} parent=0 // pred_check
    _
  $region15: #{tpu_custom_call.1} parent=0 // pred_check_branch
    %245 = sbr.rel (0) target = $region17
  $region16: #{tpu_custom_call.1} parent=0 // pred_region
    _
  $region17: #{tpu_custom_call.1} parent=0 // pred_fallthru
    _

</llo_original>
